<compile_context>
chip_gen: v7x
topology: tpu7x:2x2x1
jax: 0.10.0
libtpu: 0.0.40
codegen_flags: <defaults>
</compile_context>

<pallas_src>
import functools

import jax
import jax.numpy as jnp
from jax.experimental import pallas as pl
from jax.experimental.pallas import tpu as pltpu


def _round_up(x, m):
    return ((x + m - 1) // m) * m


def _rnn_kernel(xw_ref, whh_t_ref, wlin_t_ref, blin_ref, out_ref, h_ref,
                *, seq_len, chunk):
    """
    xw_ref    : (Tc, Bp, Hp) f32   current time-chunk of x @ W_ih^T (lane dense)
    whh_t_ref : (Hp, Hp)     bf16  W_hh^T, zero padded
    wlin_t_ref: (Hp, Op)     bf16  W_lin^T, zero padded
    blin_ref  : (1,  Op)     f32   linear bias, zero padded
    out_ref   : (Bp, Op)     f32   linear(h_n), padded (written on last chunk)
    h_ref     : (Bp, Hp)     f32   VMEM scratch: hidden state carried across chunks
    """
    c = pl.program_id(0)
    n_chunks = pl.num_programs(0)

    @pl.when(c == 0)
    def _():
        h_ref[...] = jnp.zeros_like(h_ref)

    # (Hp x Hp) bf16 = Hp*Hp/8192 vregs: 8 vregs at Hp=128, fine for Hp<=256.
    # For larger Hp keep W_hh as a ref inside step() to avoid spills.
    whh_t = whh_t_ref[...]
    needs_mask = (seq_len % chunk) != 0   # trace-time constant

    def step(t, h):
        xw_t = xw_ref[t]                                      # (Bp, Hp) f32
        hh = jnp.dot(h.astype(jnp.bfloat16), whh_t,
                     preferred_element_type=jnp.float32)
        h_new = jnp.tanh(xw_t + hh)
        if needs_mask:                                        # only if S % Tc != 0
            h_new = jnp.where(c * chunk + t < seq_len, h_new, h)
        return h_new

    h = jax.lax.fori_loop(0, chunk, step, h_ref[...], unroll=True)
    h_ref[...] = h

    @pl.when(c == n_chunks - 1)
    def _():
        # y = h_n @ W_lin^T + b_lin    (lane-dense (Bp, Op) store)
        y = jnp.dot(h.astype(jnp.bfloat16), wlin_t_ref[...],
                    preferred_element_type=jnp.float32)
        out_ref[...] = (y + blin_ref[...]).astype(out_ref.dtype)


@jax.jit
def simple_rnn_forward(x, w_ih, w_hh, w_lin, b_lin):
    """x: (batch, seq, input) f32, PyTorch batch_first layout.
    Returns (1, batch, output_size), matching self.linear(h_n)."""
    B, S, I = x.shape
    H = w_ih.shape[0]
    O = w_lin.shape[0]

    Bp = _round_up(B, 8)        # sublane alignment
    Hp = _round_up(H, 128)      # lane alignment for hidden / contraction dim
    Op = _round_up(O, 128)      # lane-dense (unmasked) output stores

    Tc = min(16, S)             # recurrence steps per grid invocation
    Sp = _round_up(S, Tc)
    n_chunks = Sp // Tc

    # Input projection in the wrapper: pure-throughput matmul with a tiny
    # contraction dim; keeps the lane-sparse raw x out of VMEM entirely.
    xw = jnp.einsum('bsi,hi->sbh', x, w_ih)                    # (S, B, H) f32
    xw = jnp.pad(xw, ((0, Sp - S), (0, Bp - B), (0, Hp - H)))  # (Sp, Bp, Hp)

    # Zero padding keeps the math exact: padded hidden units see zero inputs and
    # zero weights, so they stay tanh(0)=0 through the recurrence and contribute
    # nothing to the linear head; padded batch rows / output cols are sliced off.
    whh_t = jnp.pad(w_hh.T, ((0, Hp - H), (0, Hp - H))).astype(jnp.bfloat16)
    wlin_t = jnp.pad(w_lin.T, ((0, Hp - H), (0, Op - O))).astype(jnp.bfloat16)
    blin = jnp.pad(b_lin, (0, Op - O)).reshape(1, Op).astype(jnp.float32)

    # VMEM budget: double-buffered xw chunk + (double-buffered) weights/bias
    # + output + h carry, plus slack.  Capped well under v7x's 64 MiB / TC.
    vmem_limit = (2 * Tc * Bp * Hp * 4
                  + 2 * (Hp * Hp * 2 + Hp * Op * 2 + Op * 4)
                  + 2 * Bp * Op * 4
                  + Bp * Hp * 4
                  + (4 << 20))
    vmem_limit = int(min(vmem_limit, 48 << 20))

    kernel = functools.partial(_rnn_kernel, seq_len=S, chunk=Tc)

    out = pl.pallas_call(
        kernel,
        out_shape=jax.ShapeDtypeStruct((Bp, Op), jnp.float32),
        grid_spec=pltpu.PrefetchScalarGridSpec(
            num_scalar_prefetch=0,
            grid=(n_chunks,),
            in_specs=[
                pl.BlockSpec((Tc, Bp, Hp), lambda c: (c, 0, 0)),   # streamed chunk
                pl.BlockSpec((Hp, Hp), lambda c: (0, 0)),          # resident weights
                pl.BlockSpec((Hp, Op), lambda c: (0, 0)),
                pl.BlockSpec((1, Op), lambda c: (0, 0)),
            ],
            out_specs=pl.BlockSpec((Bp, Op), lambda c: (0, 0)),    # resident output
            scratch_shapes=[pltpu.VMEM((Bp, Hp), jnp.float32)],    # hidden-state carry
        ),
        compiler_params=pltpu.CompilerParams(
            dimension_semantics=("arbitrary",),   # sequential recurrence over time
            vmem_limit_bytes=vmem_limit,
        ),
    )(xw, whh_t, wlin_t, blin)

    # TODO(synk): on v7x (2 TCs) a batch-block parallel grid axis could use the
    # second core when Bp >= 16; skipped here since batch is tiny.
    return out[:B, :O][None]   # (1, B, O), matching self.linear(h_n)


def simple_rnn_reference(x, w_ih, w_hh, w_lin, b_lin):
    B, S, I = x.shape
    H = w_ih.shape[0]

    def step(h, x_t):
        h_new = jnp.tanh(x_t @ w_ih.T + h @ w_hh.T)
        return h_new, None

    h0 = jnp.zeros((B, H), jnp.float32)
    h_n, _ = jax.lax.scan(step, h0, jnp.transpose(x, (1, 0, 2)))
    return (h_n @ w_lin.T + b_lin)[None]


if __name__ == "__main__":
    # Small shapes consistent with the module's forward.
    batch, seq, input_size, hidden_size, output_size = 2, 8, 4, 32, 8

    key = jax.random.PRNGKey(0)
    k_x, k_ih, k_hh, k_w, k_b = jax.random.split(key, 5)

    x = jax.random.normal(k_x, (batch, seq, input_size), jnp.float32)
    # Deterministic "init": uniform(-1/sqrt(H), 1/sqrt(H)) like PyTorch defaults.
    bound = 1.0 / jnp.sqrt(jnp.float32(hidden_size))
    w_ih = jax.random.uniform(k_ih, (hidden_size, input_size), jnp.float32, -bound, bound)
    w_hh = jax.random.uniform(k_hh, (hidden_size, hidden_size), jnp.float32, -bound, bound)
    w_lin = jax.random.uniform(k_w, (output_size, hidden_size), jnp.float32, -bound, bound)
    b_lin = jax.random.uniform(k_b, (output_size,), jnp.float32, -bound, bound)

    out = simple_rnn_forward(x, w_ih, w_hh, w_lin, b_lin)
    out = jax.block_until_ready(out)

    ref = simple_rnn_reference(x, w_ih, w_hh, w_lin, b_lin)
    assert out.shape == (1, batch, output_size)
    assert jnp.allclose(out, ref, atol=2e-2, rtol=2e-2)

    print("KERNEL_OK")
</pallas_src>

<mosaic_0001>
module attributes {stable_mosaic.version = 11 : i64} {
  func.func @_rnn_kernel(%arg0: i32, %arg1: memref<8x8x128xf32, #tpu.memory_space<vmem>>, %arg2: memref<128x128xbf16, #tpu.memory_space<vmem>>, %arg3: memref<128x128xbf16, #tpu.memory_space<vmem>>, %arg4: memref<1x128xf32, #tpu.memory_space<vmem>>, %arg5: memref<8x128xf32, #tpu.memory_space<vmem>>, %arg6: memref<8x128xf32, #tpu.memory_space<vmem>>) attributes {dimension_semantics = [#tpu.dimension_semantics<arbitrary>], iteration_bounds = array<i64: 1>, scalar_prefetch = 0 : i64, scratch_operands = 1 : i64, tpu.core_type = #tpu.core_type<tc>, window_params = [{transform_indices = @transform_0, window_bounds = array<i64: 8, 8, 128>}, {pipeline_mode = #tpu.pipeline_mode<synchronous>, transform_indices = @transform_1, window_bounds = array<i64: 128, 128>}, {pipeline_mode = #tpu.pipeline_mode<synchronous>, transform_indices = @transform_2, window_bounds = array<i64: 128, 128>}, {pipeline_mode = #tpu.pipeline_mode<synchronous>, transform_indices = @transform_3, window_bounds = array<i64: 1, 128>}, {pipeline_mode = #tpu.pipeline_mode<synchronous>, transform_indices = @transform_4, window_bounds = array<i64: 8, 128>}]} {
    %c0_i32 = arith.constant 0 : i32
    %0 = arith.cmpi eq, %arg0, %c0_i32 : i32
    %1 = arith.extui %0 : i1 to i32
    %c0_i32_0 = arith.constant 0 : i32
    %2 = arith.cmpi ne, %1, %c0_i32_0 : i32
    scf.if %2 {
      %cst_32 = arith.constant 0.000000e+00 : f32
      %65 = vector.broadcast %cst_32 : f32 to vector<8x128xf32>
      %c0_33 = arith.constant 0 : index
      %c0_34 = arith.constant 0 : index
      %66 = vector.load %arg6[%c0_33, %c0_34] : memref<8x128xf32, #tpu.memory_space<vmem>>, vector<8x128xf32>
      tpu.vector_store %arg6[%c0_33, %c0_34], %65 {strides = array<i32>} : memref<8x128xf32, #tpu.memory_space<vmem>>, vector<8x128xf32>,
    } else {
    }
    %c0 = arith.constant 0 : index
    %c0_1 = arith.constant 0 : index
    %3 = vector.load %arg2[%c0, %c0_1] : memref<128x128xbf16, #tpu.memory_space<vmem>>, vector<128x128xbf16>
    %c0_2 = arith.constant 0 : index
    %c0_3 = arith.constant 0 : index
    %4 = vector.load %arg6[%c0_2, %c0_3] : memref<8x128xf32, #tpu.memory_space<vmem>>, vector<8x128xf32>
    %c0_i32_4 = arith.constant 0 : i32
    %5 = arith.index_cast %c0_i32_4 : i32 to index
    %c0_5 = arith.constant 0 : index
    %c0_6 = arith.constant 0 : index
    %6 = vector.load %arg1[%5, %c0_5, %c0_6] : memref<8x8x128xf32, #tpu.memory_space<vmem>>, vector<1x8x128xf32>
    %7 = vector.shape_cast %6 : vector<1x8x128xf32> to vector<8x128xf32>
    %8 = arith.truncf %4 : vector<8x128xf32> to vector<8x128xbf16>
    %cst = arith.constant dense<0.000000e+00> : vector<8x128xf32>
    %9 = tpu.matmul %8, %3, %cst {dimension_numbers = #tpu.dot_dimension_numbers<[1], [0], [0], [1], [0, 0, 1, 1], [], []>} : vector<8x128xbf16>, vector<128x128xbf16>, vector<8x128xf32> -> vector<8x128xf32>
    %10 = arith.addf %7, %9 : vector<8x128xf32>
    %11 = math.tanh %10 : vector<8x128xf32>
    %c1_i32 = arith.constant 1 : i32
    %12 = arith.index_cast %c1_i32 : i32 to index
    %c0_7 = arith.constant 0 : index
    %c0_8 = arith.constant 0 : index
    %13 = vector.load %arg1[%12, %c0_7, %c0_8] : memref<8x8x128xf32, #tpu.memory_space<vmem>>, vector<1x8x128xf32>
    %14 = vector.shape_cast %13 : vector<1x8x128xf32> to vector<8x128xf32>
    %15 = arith.truncf %11 : vector<8x128xf32> to vector<8x128xbf16>
    %cst_9 = arith.constant dense<0.000000e+00> : vector<8x128xf32>
    %16 = tpu.matmul %15, %3, %cst_9 {dimension_numbers = #tpu.dot_dimension_numbers<[1], [0], [0], [1], [0, 0, 1, 1], [], []>} : vector<8x128xbf16>, vector<128x128xbf16>, vector<8x128xf32> -> vector<8x128xf32>
    %17 = arith.addf %14, %16 : vector<8x128xf32>
    %18 = math.tanh %17 : vector<8x128xf32>
    %c2_i32 = arith.constant 2 : i32
    %19 = arith.index_cast %c2_i32 : i32 to index
    %c0_10 = arith.constant 0 : index
    %c0_11 = arith.constant 0 : index
    %20 = vector.load %arg1[%19, %c0_10, %c0_11] : memref<8x8x128xf32, #tpu.memory_space<vmem>>, vector<1x8x128xf32>
    %21 = vector.shape_cast %20 : vector<1x8x128xf32> to vector<8x128xf32>
    %22 = arith.truncf %18 : vector<8x128xf32> to vector<8x128xbf16>
    %cst_12 = arith.constant dense<0.000000e+00> : vector<8x128xf32>
    %23 = tpu.matmul %22, %3, %cst_12 {dimension_numbers = #tpu.dot_dimension_numbers<[1], [0], [0], [1], [0, 0, 1, 1], [], []>} : vector<8x128xbf16>, vector<128x128xbf16>, vector<8x128xf32> -> vector<8x128xf32>
    %24 = arith.addf %21, %23 : vector<8x128xf32>
    %25 = math.tanh %24 : vector<8x128xf32>
    %c3_i32 = arith.constant 3 : i32
    %26 = arith.index_cast %c3_i32 : i32 to index
    %c0_13 = arith.constant 0 : index
    %c0_14 = arith.constant 0 : index
    %27 = vector.load %arg1[%26, %c0_13, %c0_14] : memref<8x8x128xf32, #tpu.memory_space<vmem>>, vector<1x8x128xf32>
    %28 = vector.shape_cast %27 : vector<1x8x128xf32> to vector<8x128xf32>
    %29 = arith.truncf %25 : vector<8x128xf32> to vector<8x128xbf16>
    %cst_15 = arith.constant dense<0.000000e+00> : vector<8x128xf32>
    %30 = tpu.matmul %29, %3, %cst_15 {dimension_numbers = #tpu.dot_dimension_numbers<[1], [0], [0], [1], [0, 0, 1, 1], [], []>} : vector<8x128xbf16>, vector<128x128xbf16>, vector<8x128xf32> -> vector<8x128xf32>
    %31 = arith.addf %28, %30 : vector<8x128xf32>
    %32 = math.tanh %31 : vector<8x128xf32>
    %c4_i32 = arith.constant 4 : i32
    %33 = arith.index_cast %c4_i32 : i32 to index
    %c0_16 = arith.constant 0 : index
    %c0_17 = arith.constant 0 : index
    %34 = vector.load %arg1[%33, %c0_16, %c0_17] : memref<8x8x128xf32, #tpu.memory_space<vmem>>, vector<1x8x128xf32>
    %35 = vector.shape_cast %34 : vector<1x8x128xf32> to vector<8x128xf32>
    %36 = arith.truncf %32 : vector<8x128xf32> to vector<8x128xbf16>
    %cst_18 = arith.constant dense<0.000000e+00> : vector<8x128xf32>
    %37 = tpu.matmul %36, %3, %cst_18 {dimension_numbers = #tpu.dot_dimension_numbers<[1], [0], [0], [1], [0, 0, 1, 1], [], []>} : vector<8x128xbf16>, vector<128x128xbf16>, vector<8x128xf32> -> vector<8x128xf32>
    %38 = arith.addf %35, %37 : vector<8x128xf32>
    %39 = math.tanh %38 : vector<8x128xf32>
    %c5_i32 = arith.constant 5 : i32
    %40 = arith.index_cast %c5_i32 : i32 to index
    %c0_19 = arith.constant 0 : index
    %c0_20 = arith.constant 0 : index
    %41 = vector.load %arg1[%40, %c0_19, %c0_20] : memref<8x8x128xf32, #tpu.memory_space<vmem>>, vector<1x8x128xf32>
    %42 = vector.shape_cast %41 : vector<1x8x128xf32> to vector<8x128xf32>
    %43 = arith.truncf %39 : vector<8x128xf32> to vector<8x128xbf16>
    %cst_21 = arith.constant dense<0.000000e+00> : vector<8x128xf32>
    %44 = tpu.matmul %43, %3, %cst_21 {dimension_numbers = #tpu.dot_dimension_numbers<[1], [0], [0], [1], [0, 0, 1, 1], [], []>} : vector<8x128xbf16>, vector<128x128xbf16>, vector<8x128xf32> -> vector<8x128xf32>
    %45 = arith.addf %42, %44 : vector<8x128xf32>
    %46 = math.tanh %45 : vector<8x128xf32>
    %c6_i32 = arith.constant 6 : i32
    %47 = arith.index_cast %c6_i32 : i32 to index
    %c0_22 = arith.constant 0 : index
    %c0_23 = arith.constant 0 : index
    %48 = vector.load %arg1[%47, %c0_22, %c0_23] : memref<8x8x128xf32, #tpu.memory_space<vmem>>, vector<1x8x128xf32>
    %49 = vector.shape_cast %48 : vector<1x8x128xf32> to vector<8x128xf32>
    %50 = arith.truncf %46 : vector<8x128xf32> to vector<8x128xbf16>
    %cst_24 = arith.constant dense<0.000000e+00> : vector<8x128xf32>
    %51 = tpu.matmul %50, %3, %cst_24 {dimension_numbers = #tpu.dot_dimension_numbers<[1], [0], [0], [1], [0, 0, 1, 1], [], []>} : vector<8x128xbf16>, vector<128x128xbf16>, vector<8x128xf32> -> vector<8x128xf32>
    %52 = arith.addf %49, %51 : vector<8x128xf32>
    %53 = math.tanh %52 : vector<8x128xf32>
    %c7_i32 = arith.constant 7 : i32
    %54 = arith.index_cast %c7_i32 : i32 to index
    %c0_25 = arith.constant 0 : index
    %c0_26 = arith.constant 0 : index
    %55 = vector.load %arg1[%54, %c0_25, %c0_26] : memref<8x8x128xf32, #tpu.memory_space<vmem>>, vector<1x8x128xf32>
    %56 = vector.shape_cast %55 : vector<1x8x128xf32> to vector<8x128xf32>
    %57 = arith.truncf %53 : vector<8x128xf32> to vector<8x128xbf16>
    %cst_27 = arith.constant dense<0.000000e+00> : vector<8x128xf32>
    %58 = tpu.matmul %57, %3, %cst_27 {dimension_numbers = #tpu.dot_dimension_numbers<[1], [0], [0], [1], [0, 0, 1, 1], [], []>} : vector<8x128xbf16>, vector<128x128xbf16>, vector<8x128xf32> -> vector<8x128xf32>
    %59 = arith.addf %56, %58 : vector<8x128xf32>
    %60 = math.tanh %59 : vector<8x128xf32>
    %c8_i32 = arith.constant 8 : i32
    %c0_28 = arith.constant 0 : index
    %c0_29 = arith.constant 0 : index
    %61 = vector.load %arg6[%c0_28, %c0_29] : memref<8x128xf32, #tpu.memory_space<vmem>>, vector<8x128xf32>
    tpu.vector_store %arg6[%c0_28, %c0_29], %60 {strides = array<i32>} : memref<8x128xf32, #tpu.memory_space<vmem>>, vector<8x128xf32>,
    %c0_i32_30 = arith.constant 0 : i32
    %62 = arith.cmpi eq, %arg0, %c0_i32_30 : i32
    %63 = arith.extui %62 : i1 to i32
    %c0_i32_31 = arith.constant 0 : i32
    %64 = arith.cmpi ne, %63, %c0_i32_31 : i32
    scf.if %64 {
      %65 = arith.truncf %60 : vector<8x128xf32> to vector<8x128xbf16>
      %c0_32 = arith.constant 0 : index
      %c0_33 = arith.constant 0 : index
      %66 = vector.load %arg3[%c0_32, %c0_33] : memref<128x128xbf16, #tpu.memory_space<vmem>>, vector<128x128xbf16>
      %cst_34 = arith.constant dense<0.000000e+00> : vector<8x128xf32>
      %67 = tpu.matmul %65, %66, %cst_34 {dimension_numbers = #tpu.dot_dimension_numbers<[1], [0], [0], [1], [0, 0, 1, 1], [], []>} : vector<8x128xbf16>, vector<128x128xbf16>, vector<8x128xf32> -> vector<8x128xf32>
      %c0_35 = arith.constant 0 : index
      %c0_36 = arith.constant 0 : index
      %68 = vector.load %arg4[%c0_35, %c0_36] : memref<1x128xf32, #tpu.memory_space<vmem>>, vector<1x128xf32>
      %69 = vector.broadcast %68 : vector<1x128xf32> to vector<8x128xf32>
      %70 = arith.addf %67, %69 : vector<8x128xf32>
      %c0_37 = arith.constant 0 : index
      %c0_38 = arith.constant 0 : index
      %71 = vector.load %arg5[%c0_37, %c0_38] : memref<8x128xf32, #tpu.memory_space<vmem>>, vector<8x128xf32>
      tpu.vector_store %arg5[%c0_37, %c0_38], %70 {strides = array<i32>} : memref<8x128xf32, #tpu.memory_space<vmem>>, vector<8x128xf32>,
    } else {
    }
    return
  }
  func.func @transform_0(%arg0: i32) -> (i32, i32, i32) {
    %c0_i32 = arith.constant 0 : i32
    %c0_i32_0 = arith.constant 0 : i32
    %c0_i32_1 = arith.constant 0 : i32
    return %arg0, %c0_i32, %c0_i32_0 : i32, i32, i32
  }
  func.func @transform_1(%arg0: i32) -> (i32, i32) {
    %c0_i32 = arith.constant 0 : i32
    %c0_i32_0 = arith.constant 0 : i32
    %c0_i32_1 = arith.constant 0 : i32
    return %c0_i32, %c0_i32_0 : i32, i32
  }
  func.func @transform_2(%arg0: i32) -> (i32, i32) {
    %c0_i32 = arith.constant 0 : i32
    %c0_i32_0 = arith.constant 0 : i32
    %c0_i32_1 = arith.constant 0 : i32
    return %c0_i32, %c0_i32_0 : i32, i32
  }
  func.func @transform_3(%arg0: i32) -> (i32, i32) {
    %c0_i32 = arith.constant 0 : i32
    %c0_i32_0 = arith.constant 0 : i32
    %c0_i32_1 = arith.constant 0 : i32
    return %c0_i32, %c0_i32_0 : i32, i32
  }
  func.func @transform_4(%arg0: i32) -> (i32, i32) {
    %c0_i32 = arith.constant 0 : i32
    %c0_i32_0 = arith.constant 0 : i32
    %c0_i32_1 = arith.constant 0 : i32
    return %c0_i32, %c0_i32_0 : i32, i32
  }
}

</mosaic_0001>

<llo_original>
// kernel: simple_rnn_forward.1
$region0: #{simple_rnn_forward.1}
  #allocation0 [shape = 'u32[]', space=smem, size = 0x4, offset = 0x4, fixed_abs, tag = 'smem constant byte address 0x4 - core index']
  #allocation1 [shape = 'u32[144,128]{1,0:T(1,128)}', space=vmem, size = 0x12000, scoped, tag = 'internal scratch']
  #allocation2 [shape = 'f32[8,128]{1,0:T(8,128)}', space=vmem, size = 0x1000, scoped, tag = 'scratch operand']
  %s0 = inlined_call_operand.vmem [shape: f32[8,8,128], index: 0, kind: input, shape index: {}]
  %s1 = inlined_call_operand.vmem [shape: bf16[128,128], index: 1, kind: input, shape index: {}]
  %s2 = inlined_call_operand.vmem [shape: bf16[128,128], index: 2, kind: input, shape index: {}]
  %s3 = inlined_call_operand.vmem [shape: f32[1,128], index: 3, kind: input, shape index: {}]
  %s4 = inlined_call_operand.vmem [shape: f32[8,128], index: 4, kind: output, shape index: {}]
  %s5 = sld [smem:[#allocation0]]
  $region34: #{simple_rnn_forward.1} parent=0
    _
  %s7 = ssub.s32 1, %s5
  %s8 = scalar_select 0, %s7, %s5
  // Predicated region
  $region2: #{simple_rnn_forward.1} parent=0 // pred_check
    _
  $region3: #{simple_rnn_forward.1} parent=0 // pred_check_branch
    %10 = sbr.rel (0) target = $region5
  $region4: #{simple_rnn_forward.1} parent=0 // pred_region
    _
  $region5: #{simple_rnn_forward.1} parent=0 // pred_fallthru
    _
  // Predicated region
  $region6: #{simple_rnn_forward.1} parent=0 // pred_check
    _
  $region7: #{simple_rnn_forward.1} parent=0 // pred_check_branch
    %12 = sbr.rel (0) target = $region9
  $region8: #{simple_rnn_forward.1} parent=0 // pred_region
    _
  $region9: #{simple_rnn_forward.1} parent=0 // pred_fallthru
    _
  // Predicated region
  $region10: #{simple_rnn_forward.1} parent=0 // pred_check
    _
  $region11: #{simple_rnn_forward.1} parent=0 // pred_check_branch
    %14 = sbr.rel (0) target = $region13
  $region12: #{simple_rnn_forward.1} parent=0 // pred_region
    _
  $region13: #{simple_rnn_forward.1} parent=0 // pred_fallthru
    _
  // Predicated region
  $region14: #{simple_rnn_forward.1} parent=0 // pred_check
    _
  $region15: #{simple_rnn_forward.1} parent=0 // pred_check_branch
    %16 = sbr.rel (0) target = $region17
  $region16: #{simple_rnn_forward.1} parent=0 // pred_region
    _
  $region17: #{simple_rnn_forward.1} parent=0 // pred_fallthru
    _
  %p18 = scmp.eq.s32.totalorder 0, 0
  // Predicated region
  $region18: #{simple_rnn_forward.1} parent=0 // pred_check
    %p19 = pneg %p18
  $region19: #{simple_rnn_forward.1} parent=0 // pred_check_branch
    %21 = sbr.rel (%p19) target = $region21
  $region20: #{simple_rnn_forward.1} parent=0 // pred_region
    %22 = vst [vmem:[#allocation2] sm:$0xff] 0.0
  $region21: #{simple_rnn_forward.1} parent=0 // pred_fallthru
    _
  %v23 = vld [vmem:[%s1] sm:$0xf]
  %v24 = vld [vmem:[%s1 + $0x4] sm:$0xf]
  %v25 = vld [vmem:[%s1 + $0x8] sm:$0xf]
  %v26 = vld [vmem:[%s1 + $0xc] sm:$0xf]
  %v27 = vld [vmem:[%s1 + $0x10] sm:$0xf]
  %v28 = vld [vmem:[%s1 + $0x14] sm:$0xf]
  %v29 = vld [vmem:[%s1 + $0x18] sm:$0xf]
  %v30 = vld [vmem:[%s1 + $0x1c] sm:$0xf]
  %v31 = vld [vmem:[%s1 + $0x20] sm:$0xf]
  %v32 = vld [vmem:[%s1 + $0x24] sm:$0xf]
  %v33 = vld [vmem:[%s1 + $0x28] sm:$0xf]
  %v34 = vld [vmem:[%s1 + $0x2c] sm:$0xf]
  %v35 = vld [vmem:[%s1 + $0x30] sm:$0xf]
  %v36 = vld [vmem:[%s1 + $0x34] sm:$0xf]
  %v37 = vld [vmem:[%s1 + $0x38] sm:$0xf]
  %v38 = vld [vmem:[%s1 + $0x3c] sm:$0xf]
  %v39 = vld [vmem:[#allocation2] sm:$0xff]
  %v40 = vld [vmem:[%s0] sm:$0xff]
  %v41 = vpack.c.bf16 %v39, %v39
  %v58 = vunpack.c.l.b16 %v23
  %v59 = vunpack.c.l.b16 %v24
  %v60 = vunpack.c.l.b16 %v25
  %v61 = vunpack.c.l.b16 %v26
  %v62 = vunpack.c.l.b16 %v27
  %v63 = vunpack.c.l.b16 %v28
  %v64 = vunpack.c.l.b16 %v29
  %v65 = vunpack.c.l.b16 %v30
  %v66 = vunpack.c.l.b16 %v31
  %v67 = vunpack.c.l.b16 %v32
  %v68 = vunpack.c.l.b16 %v33
  %v69 = vunpack.c.l.b16 %v34
  %v70 = vunpack.c.l.b16 %v35
  %v71 = vunpack.c.l.b16 %v36
  %v72 = vunpack.c.l.b16 %v37
  %v73 = vunpack.c.l.b16 %v38
  %v74 = vpack.c.b16 %v59, %v58
  %v75 = vpack.c.b16 %v61, %v60
  %v76 = vpack.c.b16 %v63, %v62
  %v77 = vpack.c.b16 %v65, %v64
  %v78 = vpack.c.b16 %v67, %v66
  %v79 = vpack.c.b16 %v69, %v68
  %v80 = vpack.c.b16 %v71, %v70
  %v81 = vpack.c.b16 %v73, %v72
  %90 = vmatprep.subr.bf16.mxu0 0
  %91 = vmatpush1.bf16.msra.mxu0 %v74
  %92 = vmatprep.subr.bf16.mxu0 0
  %93 = vmatpush1.bf16.msra.mxu0 %v75
  %94 = vmatprep.subr.bf16.mxu0 0
  %95 = vmatpush1.bf16.msra.mxu0 %v76
  %96 = vmatprep.subr.bf16.mxu0 0
  %97 = vmatpush1.bf16.msra.mxu0 %v77
  %98 = vmatprep.subr.bf16.mxu0 0
  %99 = vmatpush1.bf16.msra.mxu0 %v78
  %100 = vmatprep.subr.bf16.mxu0 0
  %101 = vmatpush1.bf16.msra.mxu0 %v79
  %102 = vmatprep.subr.bf16.mxu0 0
  %103 = vmatpush1.bf16.msra.mxu0 %v80
  %104 = vmatprep.subr.bf16.mxu0 0
  %105 = vmatpush1.bf16.msra.mxu0 %v81
  %106 = vmatprep.subr.bf16.mxu0 0
  %107 = vmatpush1.bf16.msra.mxu0 0
  %108 = vmatprep.subr.bf16.mxu0 0
  %109 = vmatpush1.bf16.msra.mxu0 0
  %110 = vmatprep.subr.bf16.mxu0 0
  %111 = vmatpush1.bf16.msra.mxu0 0
  %112 = vmatprep.subr.bf16.mxu0 0
  %113 = vmatpush1.bf16.msra.mxu0 0
  %114 = vmatprep.subr.bf16.mxu0 0
  %115 = vmatpush1.bf16.msra.mxu0 0
  %116 = vmatprep.subr.bf16.mxu0 0
  %117 = vmatpush1.bf16.msra.mxu0 0
  %118 = vmatprep.subr.bf16.mxu0 0
  %119 = vmatpush1.bf16.msra.mxu0 0
  %120 = vmatprep.subr.bf16.mxu0 0
  %121 = vmatpush1.bf16.msra.mxu0 0
  %122 = vmatprep.mubr.bf16.mxu0 0
  %123 = vmatmul.mubr.bf16.gmra.mrb[0].mxu0 %v41
  %v124 = vpop.f32.mrb[0].mxu0
  %v125 = vadd.f32 0.0, %v124
  %v126 = vpop.f32.mrb[0].mxu0
  %v127 = vpop.f32.mrb[0].mxu0
  %v128 = vpop.f32.mrb[0].mxu0
  %129 = vdwg.mxu0
  %v130 = vadd.f32 %v40, %v125
  %v131 = vtanh.pop %v130
  %s132 = scalar_lea.vmem %s0, 8
  %v133 = vld [vmem:[%s132] sm:$0xff]
  %v134 = vpack.c.bf16 %v131, %v131
  %135 = vmatprep.subr.bf16.mxu0 0
  %136 = vmatpush1.bf16.msra.mxu0 %v74
  %137 = vmatprep.subr.bf16.mxu0 0
  %138 = vmatpush1.bf16.msra.mxu0 %v75
  %139 = vmatprep.subr.bf16.mxu0 0
  %140 = vmatpush1.bf16.msra.mxu0 %v76
  %141 = vmatprep.subr.bf16.mxu0 0
  %142 = vmatpush1.bf16.msra.mxu0 %v77
  %143 = vmatprep.subr.bf16.mxu0 0
  %144 = vmatpush1.bf16.msra.mxu0 %v78
  %145 = vmatprep.subr.bf16.mxu0 0
  %146 = vmatpush1.bf16.msra.mxu0 %v79
  %147 = vmatprep.subr.bf16.mxu0 0
  %148 = vmatpush1.bf16.msra.mxu0 %v80
  %149 = vmatprep.subr.bf16.mxu0 0
  %150 = vmatpush1.bf16.msra.mxu0 %v81
  %151 = vmatprep.subr.bf16.mxu0 0
  %152 = vmatpush1.bf16.msra.mxu0 0
  %153 = vmatprep.subr.bf16.mxu0 0
  %154 = vmatpush1.bf16.msra.mxu0 0
  %155 = vmatprep.subr.bf16.mxu0 0
  %156 = vmatpush1.bf16.msra.mxu0 0
  %157 = vmatprep.subr.bf16.mxu0 0
  %158 = vmatpush1.bf16.msra.mxu0 0
  %159 = vmatprep.subr.bf16.mxu0 0
  %160 = vmatpush1.bf16.msra.mxu0 0
  %161 = vmatprep.subr.bf16.mxu0 0
  %162 = vmatpush1.bf16.msra.mxu0 0
  %163 = vmatprep.subr.bf16.mxu0 0
  %164 = vmatpush1.bf16.msra.mxu0 0
  %165 = vmatprep.subr.bf16.mxu0 0
  %166 = vmatpush1.bf16.msra.mxu0 0
  %167 = vmatprep.mubr.bf16.mxu0 0
  %168 = vmatmul.mubr.bf16.gmra.mrb[0].mxu0 %v134
  %v169 = vpop.f32.mrb[0].mxu0
  %v170 = vadd.f32 0.0, %v169
  %v171 = vpop.f32.mrb[0].mxu0
  %v172 = vpop.f32.mrb[0].mxu0
  %v173 = vpop.f32.mrb[0].mxu0
  %174 = vdwg.mxu0
  %v175 = vadd.f32 %v133, %v170
  %v176 = vtanh.pop %v175
  %s177 = scalar_lea.vmem %s0, 16
  %v178 = vld [vmem:[%s177] sm:$0xff]
  %v179 = vpack.c.bf16 %v176, %v176
  %180 = vmatprep.subr.bf16.mxu0 0
  %181 = vmatpush1.bf16.msra.mxu0 %v74
  %182 = vmatprep.subr.bf16.mxu0 0
  %183 = vmatpush1.bf16.msra.mxu0 %v75
  %184 = vmatprep.subr.bf16.mxu0 0
  %185 = vmatpush1.bf16.msra.mxu0 %v76
  %186 = vmatprep.subr.bf16.mxu0 0
  %187 = vmatpush1.bf16.msra.mxu0 %v77
  %188 = vmatprep.subr.bf16.mxu0 0
  %189 = vmatpush1.bf16.msra.mxu0 %v78
  %190 = vmatprep.subr.bf16.mxu0 0
  %191 = vmatpush1.bf16.msra.mxu0 %v79
  %192 = vmatprep.subr.bf16.mxu0 0
  %193 = vmatpush1.bf16.msra.mxu0 %v80
  %194 = vmatprep.subr.bf16.mxu0 0
  %195 = vmatpush1.bf16.msra.mxu0 %v81
  %196 = vmatprep.subr.bf16.mxu0 0
  %197 = vmatpush1.bf16.msra.mxu0 0
  %198 = vmatprep.subr.bf16.mxu0 0
  %199 = vmatpush1.bf16.msra.mxu0 0
  %200 = vmatprep.subr.bf16.mxu0 0
  %201 = vmatpush1.bf16.msra.mxu0 0
  %202 = vmatprep.subr.bf16.mxu0 0
  %203 = vmatpush1.bf16.msra.mxu0 0
  %204 = vmatprep.subr.bf16.mxu0 0
  %205 = vmatpush1.bf16.msra.mxu0 0
  %206 = vmatprep.subr.bf16.mxu0 0
  %207 = vmatpush1.bf16.msra.mxu0 0
  %208 = vmatprep.subr.bf16.mxu0 0
  %209 = vmatpush1.bf16.msra.mxu0 0
  %210 = vmatprep.subr.bf16.mxu0 0
  %211 = vmatpush1.bf16.msra.mxu0 0
  %212 = vmatprep.mubr.bf16.mxu0 0
  %213 = vmatmul.mubr.bf16.gmra.mrb[0].mxu0 %v179
  %v214 = vpop.f32.mrb[0].mxu0
  %v215 = vadd.f32 0.0, %v214
  %v216 = vpop.f32.mrb[0].mxu0
  %v217 = vpop.f32.mrb[0].mxu0
  %v218 = vpop.f32.mrb[0].mxu0
  %219 = vdwg.mxu0
  %v220 = vadd.f32 %v178, %v215
  %v221 = vtanh.pop %v220
  %s222 = scalar_lea.vmem %s0, 24
  %v223 = vld [vmem:[%s222] sm:$0xff]
  %v224 = vpack.c.bf16 %v221, %v221
  %225 = vmatprep.subr.bf16.mxu0 0
  %226 = vmatpush1.bf16.msra.mxu0 %v74
  %227 = vmatprep.subr.bf16.mxu0 0
  %228 = vmatpush1.bf16.msra.mxu0 %v75
  %229 = vmatprep.subr.bf16.mxu0 0
  %230 = vmatpush1.bf16.msra.mxu0 %v76
  %231 = vmatprep.subr.bf16.mxu0 0
  %232 = vmatpush1.bf16.msra.mxu0 %v77
  %233 = vmatprep.subr.bf16.mxu0 0
  %234 = vmatpush1.bf16.msra.mxu0 %v78
  %235 = vmatprep.subr.bf16.mxu0 0
  %236 = vmatpush1.bf16.msra.mxu0 %v79
  %237 = vmatprep.subr.bf16.mxu0 0
  %238 = vmatpush1.bf16.msra.mxu0 %v80
  %239 = vmatprep.subr.bf16.mxu0 0
  %240 = vmatpush1.bf16.msra.mxu0 %v81
  %241 = vmatprep.subr.bf16.mxu0 0
  %242 = vmatpush1.bf16.msra.mxu0 0
  %243 = vmatprep.subr.bf16.mxu0 0
  %244 = vmatpush1.bf16.msra.mxu0 0
  %245 = vmatprep.subr.bf16.mxu0 0
  %246 = vmatpush1.bf16.msra.mxu0 0
  %247 = vmatprep.subr.bf16.mxu0 0
  %248 = vmatpush1.bf16.msra.mxu0 0
  %249 = vmatprep.subr.bf16.mxu0 0
  %250 = vmatpush1.bf16.msra.mxu0 0
  %251 = vmatprep.subr.bf16.mxu0 0
  %252 = vmatpush1.bf16.msra.mxu0 0
  %253 = vmatprep.subr.bf16.mxu0 0
  %254 = vmatpush1.bf16.msra.mxu0 0
  %255 = vmatprep.subr.bf16.mxu0 0
  %256 = vmatpush1.bf16.msra.mxu0 0
  %257 = vmatprep.mubr.bf16.mxu0 0
  %258 = vmatmul.mubr.bf16.gmra.mrb[0].mxu0 %v224
  %v259 = vpop.f32.mrb[0].mxu0
  %v260 = vadd.f32 0.0, %v259
  %v261 = vpop.f32.mrb[0].mxu0
  %v262 = vpop.f32.mrb[0].mxu0
  %v263 = vpop.f32.mrb[0].mxu0
  %264 = vdwg.mxu0
  %v265 = vadd.f32 %v223, %v260
  %v266 = vtanh.pop %v265
  %s267 = scalar_lea.vmem %s0, 32
  %v268 = vld [vmem:[%s267] sm:$0xff]
  %v269 = vpack.c.bf16 %v266, %v266
  %270 = vmatprep.subr.bf16.mxu0 0
  %271 = vmatpush1.bf16.msra.mxu0 %v74
  %272 = vmatprep.subr.bf16.mxu0 0
  %273 = vmatpush1.bf16.msra.mxu0 %v75
  %274 = vmatprep.subr.bf16.mxu0 0
  %275 = vmatpush1.bf16.msra.mxu0 %v76
  %276 = vmatprep.subr.bf16.mxu0 0
  %277 = vmatpush1.bf16.msra.mxu0 %v77
  %278 = vmatprep.subr.bf16.mxu0 0
  %279 = vmatpush1.bf16.msra.mxu0 %v78
  %280 = vmatprep.subr.bf16.mxu0 0
  %281 = vmatpush1.bf16.msra.mxu0 %v79
  %282 = vmatprep.subr.bf16.mxu0 0
  %283 = vmatpush1.bf16.msra.mxu0 %v80
  %284 = vmatprep.subr.bf16.mxu0 0
  %285 = vmatpush1.bf16.msra.mxu0 %v81
  %286 = vmatprep.subr.bf16.mxu0 0
  %287 = vmatpush1.bf16.msra.mxu0 0
  %288 = vmatprep.subr.bf16.mxu0 0
  %289 = vmatpush1.bf16.msra.mxu0 0
  %290 = vmatprep.subr.bf16.mxu0 0
  %291 = vmatpush1.bf16.msra.mxu0 0
  %292 = vmatprep.subr.bf16.mxu0 0
  %293 = vmatpush1.bf16.msra.mxu0 0
  %294 = vmatprep.subr.bf16.mxu0 0
  %295 = vmatpush1.bf16.msra.mxu0 0
  %296 = vmatprep.subr.bf16.mxu0 0
  %297 = vmatpush1.bf16.msra.mxu0 0
  %298 = vmatprep.subr.bf16.mxu0 0
  %299 = vmatpush1.bf16.msra.mxu0 0
  %300 = vmatprep.subr.bf16.mxu0 0
  %301 = vmatpush1.bf16.msra.mxu0 0
  %302 = vmatprep.mubr.bf16.mxu0 0
  %303 = vmatmul.mubr.bf16.gmra.mrb[0].mxu0 %v269
  %v304 = vpop.f32.mrb[0].mxu0
  %v305 = vadd.f32 0.0, %v304
  %v306 = vpop.f32.mrb[0].mxu0
  %v307 = vpop.f32.mrb[0].mxu0
  %v308 = vpop.f32.mrb[0].mxu0
  %309 = vdwg.mxu0
  %v310 = vadd.f32 %v268, %v305
  %v311 = vtanh.pop %v310
  %s312 = scalar_lea.vmem %s0, 40
  %v313 = vld [vmem:[%s312] sm:$0xff]
  %v314 = vpack.c.bf16 %v311, %v311
  %315 = vmatprep.subr.bf16.mxu0 0
  %316 = vmatpush1.bf16.msra.mxu0 %v74
  %317 = vmatprep.subr.bf16.mxu0 0
  %318 = vmatpush1.bf16.msra.mxu0 %v75
  %319 = vmatprep.subr.bf16.mxu0 0
  %320 = vmatpush1.bf16.msra.mxu0 %v76
  %321 = vmatprep.subr.bf16.mxu0 0
  %322 = vmatpush1.bf16.msra.mxu0 %v77
  %323 = vmatprep.subr.bf16.mxu0 0
  %324 = vmatpush1.bf16.msra.mxu0 %v78
  %325 = vmatprep.subr.bf16.mxu0 0
  %326 = vmatpush1.bf16.msra.mxu0 %v79
  %327 = vmatprep.subr.bf16.mxu0 0
  %328 = vmatpush1.bf16.msra.mxu0 %v80
  %329 = vmatprep.subr.bf16.mxu0 0
  %330 = vmatpush1.bf16.msra.mxu0 %v81
  %331 = vmatprep.subr.bf16.mxu0 0
  %332 = vmatpush1.bf16.msra.mxu0 0
  %333 = vmatprep.subr.bf16.mxu0 0
  %334 = vmatpush1.bf16.msra.mxu0 0
  %335 = vmatprep.subr.bf16.mxu0 0
  %336 = vmatpush1.bf16.msra.mxu0 0
  %337 = vmatprep.subr.bf16.mxu0 0
  %338 = vmatpush1.bf16.msra.mxu0 0
  %339 = vmatprep.subr.bf16.mxu0 0
  %340 = vmatpush1.bf16.msra.mxu0 0
  %341 = vmatprep.subr.bf16.mxu0 0
  %342 = vmatpush1.bf16.msra.mxu0 0
  %343 = vmatprep.subr.bf16.mxu0 0
  %344 = vmatpush1.bf16.msra.mxu0 0
  %345 = vmatprep.subr.bf16.mxu0 0
  %346 = vmatpush1.bf16.msra.mxu0 0
  %347 = vmatprep.mubr.bf16.mxu0 0
  %348 = vmatmul.mubr.bf16.gmra.mrb[0].mxu0 %v314
  %v349 = vpop.f32.mrb[0].mxu0
  %v350 = vadd.f32 0.0, %v349
  %v351 = vpop.f32.mrb[0].mxu0
  %v352 = vpop.f32.mrb[0].mxu0
  %v353 = vpop.f32.mrb[0].mxu0
  %354 = vdwg.mxu0
  %v355 = vadd.f32 %v313, %v350
  %v356 = vtanh.pop %v355
  %s357 = scalar_lea.vmem %s0, 48
  %v358 = vld [vmem:[%s357] sm:$0xff]
  %v359 = vpack.c.bf16 %v356, %v356
  %360 = vmatprep.subr.bf16.mxu0 0
  %361 = vmatpush1.bf16.msra.mxu0 %v74
  %362 = vmatprep.subr.bf16.mxu0 0
  %363 = vmatpush1.bf16.msra.mxu0 %v75
  %364 = vmatprep.subr.bf16.mxu0 0
  %365 = vmatpush1.bf16.msra.mxu0 %v76
  %366 = vmatprep.subr.bf16.mxu0 0
  %367 = vmatpush1.bf16.msra.mxu0 %v77
  %368 = vmatprep.subr.bf16.mxu0 0
  %369 = vmatpush1.bf16.msra.mxu0 %v78
  %370 = vmatprep.subr.bf16.mxu0 0
  %371 = vmatpush1.bf16.msra.mxu0 %v79
  %372 = vmatprep.subr.bf16.mxu0 0
  %373 = vmatpush1.bf16.msra.mxu0 %v80
  %374 = vmatprep.subr.bf16.mxu0 0
  %375 = vmatpush1.bf16.msra.mxu0 %v81
  %376 = vmatprep.subr.bf16.mxu0 0
  %377 = vmatpush1.bf16.msra.mxu0 0
  %378 = vmatprep.subr.bf16.mxu0 0
  %379 = vmatpush1.bf16.msra.mxu0 0
  %380 = vmatprep.subr.bf16.mxu0 0
  %381 = vmatpush1.bf16.msra.mxu0 0
  %382 = vmatprep.subr.bf16.mxu0 0
  %383 = vmatpush1.bf16.msra.mxu0 0
  %384 = vmatprep.subr.bf16.mxu0 0
  %385 = vmatpush1.bf16.msra.mxu0 0
  %386 = vmatprep.subr.bf16.mxu0 0
  %387 = vmatpush1.bf16.msra.mxu0 0
  %388 = vmatprep.subr.bf16.mxu0 0
  %389 = vmatpush1.bf16.msra.mxu0 0
  %390 = vmatprep.subr.bf16.mxu0 0
  %391 = vmatpush1.bf16.msra.mxu0 0
  %392 = vmatprep.mubr.bf16.mxu0 0
  %393 = vmatmul.mubr.bf16.gmra.mrb[0].mxu0 %v359
  %v394 = vpop.f32.mrb[0].mxu0
  %v395 = vadd.f32 0.0, %v394
  %v396 = vpop.f32.mrb[0].mxu0
  %v397 = vpop.f32.mrb[0].mxu0
  %v398 = vpop.f32.mrb[0].mxu0
  %399 = vdwg.mxu0
  %v400 = vadd.f32 %v358, %v395
  %v401 = vtanh.pop %v400
  %s402 = scalar_lea.vmem %s0, 56
  %v403 = vld [vmem:[%s402] sm:$0xff]
  %v404 = vpack.c.bf16 %v401, %v401
  %405 = vmatprep.subr.bf16.mxu0 0
  %406 = vmatpush1.bf16.msra.mxu0 %v74
  %407 = vmatprep.subr.bf16.mxu0 0
  %408 = vmatpush1.bf16.msra.mxu0 %v75
  %409 = vmatprep.subr.bf16.mxu0 0
  %410 = vmatpush1.bf16.msra.mxu0 %v76
  %411 = vmatprep.subr.bf16.mxu0 0
  %412 = vmatpush1.bf16.msra.mxu0 %v77
  %413 = vmatprep.subr.bf16.mxu0 0
  %414 = vmatpush1.bf16.msra.mxu0 %v78
  %415 = vmatprep.subr.bf16.mxu0 0
  %416 = vmatpush1.bf16.msra.mxu0 %v79
  %417 = vmatprep.subr.bf16.mxu0 0
  %418 = vmatpush1.bf16.msra.mxu0 %v80
  %419 = vmatprep.subr.bf16.mxu0 0
  %420 = vmatpush1.bf16.msra.mxu0 %v81
  %421 = vmatprep.subr.bf16.mxu0 0
  %422 = vmatpush1.bf16.msra.mxu0 0
  %423 = vmatprep.subr.bf16.mxu0 0
  %424 = vmatpush1.bf16.msra.mxu0 0
  %425 = vmatprep.subr.bf16.mxu0 0
  %426 = vmatpush1.bf16.msra.mxu0 0
  %427 = vmatprep.subr.bf16.mxu0 0
  %428 = vmatpush1.bf16.msra.mxu0 0
  %429 = vmatprep.subr.bf16.mxu0 0
  %430 = vmatpush1.bf16.msra.mxu0 0
  %431 = vmatprep.subr.bf16.mxu0 0
  %432 = vmatpush1.bf16.msra.mxu0 0
  %433 = vmatprep.subr.bf16.mxu0 0
  %434 = vmatpush1.bf16.msra.mxu0 0
  %435 = vmatprep.subr.bf16.mxu0 0
  %436 = vmatpush1.bf16.msra.mxu0 0
  %437 = vmatprep.mubr.bf16.mxu0 0
  %438 = vmatmul.mubr.bf16.gmra.mrb[0].mxu0 %v404
  %v439 = vpop.f32.mrb[0].mxu0
  %v440 = vadd.f32 0.0, %v439
  %v441 = vpop.f32.mrb[0].mxu0
  %v442 = vpop.f32.mrb[0].mxu0
  %v443 = vpop.f32.mrb[0].mxu0
  %444 = vdwg.mxu0
  %v445 = vadd.f32 %v403, %v440
  %v446 = vtanh.pop %v445
  %447 = vst [vmem:[#allocation2] sm:$0xff] %v446
  // Predicated region
  $region22: #{simple_rnn_forward.1} parent=0 // pred_check
    %p448 = pneg %p18
  $region23: #{simple_rnn_forward.1} parent=0 // pred_check_branch
    %450 = sbr.rel (%p448) target = $region25
  $region24: #{simple_rnn_forward.1} parent=0 // pred_region
    %v451 = vpack.c.bf16 %v446, %v446
    %v452 = vld [vmem:[%s2] sm:$0xf]
    %v453 = vld [vmem:[%s2 + $0x4] sm:$0xf]
    %v454 = vld [vmem:[%s2 + $0x8] sm:$0xf]
    %v455 = vld [vmem:[%s2 + $0xc] sm:$0xf]
    %v456 = vld [vmem:[%s2 + $0x10] sm:$0xf]
    %v457 = vld [vmem:[%s2 + $0x14] sm:$0xf]
    %v458 = vld [vmem:[%s2 + $0x18] sm:$0xf]
    %v459 = vld [vmem:[%s2 + $0x1c] sm:$0xf]
    %v460 = vld [vmem:[%s2 + $0x20] sm:$0xf]
    %v461 = vld [vmem:[%s2 + $0x24] sm:$0xf]
    %v462 = vld [vmem:[%s2 + $0x28] sm:$0xf]
    %v463 = vld [vmem:[%s2 + $0x2c] sm:$0xf]
    %v464 = vld [vmem:[%s2 + $0x30] sm:$0xf]
    %v465 = vld [vmem:[%s2 + $0x34] sm:$0xf]
    %v466 = vld [vmem:[%s2 + $0x38] sm:$0xf]
    %v467 = vld [vmem:[%s2 + $0x3c] sm:$0xf]
    %v468 = vld [vmem:[%s3] sm:$0x1]
    %v470 = vlaneseq
    %v471 = vshrl.u32 %v470, 7
    %v472 = vsub.s32 0, %v471
    %v473 = vrot.slane %v468, %v472
    %v491 = vunpack.c.l.b16 %v452
    %v492 = vunpack.c.l.b16 %v453
    %v493 = vunpack.c.l.b16 %v454
    %v494 = vunpack.c.l.b16 %v455
    %v495 = vunpack.c.l.b16 %v456
    %v496 = vunpack.c.l.b16 %v457
    %v497 = vunpack.c.l.b16 %v458
    %v498 = vunpack.c.l.b16 %v459
    %v499 = vunpack.c.l.b16 %v460
    %v500 = vunpack.c.l.b16 %v461
    %v501 = vunpack.c.l.b16 %v462
    %v502 = vunpack.c.l.b16 %v463
    %v503 = vunpack.c.l.b16 %v464
    %v504 = vunpack.c.l.b16 %v465
    %v505 = vunpack.c.l.b16 %v466
    %v506 = vunpack.c.l.b16 %v467
    %v507 = vpack.c.b16 %v492, %v491
    %v508 = vpack.c.b16 %v494, %v493
    %v509 = vpack.c.b16 %v496, %v495
    %v510 = vpack.c.b16 %v498, %v497
    %v511 = vpack.c.b16 %v500, %v499
    %v512 = vpack.c.b16 %v502, %v501
    %v513 = vpack.c.b16 %v504, %v503
    %v514 = vpack.c.b16 %v506, %v505
    %523 = vmatprep.subr.bf16.mxu0 0
    %524 = vmatpush1.bf16.msra.mxu0 %v507
    %525 = vmatprep.subr.bf16.mxu0 0
    %526 = vmatpush1.bf16.msra.mxu0 %v508
    %527 = vmatprep.subr.bf16.mxu0 0
    %528 = vmatpush1.bf16.msra.mxu0 %v509
    %529 = vmatprep.subr.bf16.mxu0 0
    %530 = vmatpush1.bf16.msra.mxu0 %v510
    %531 = vmatprep.subr.bf16.mxu0 0
    %532 = vmatpush1.bf16.msra.mxu0 %v511
    %533 = vmatprep.subr.bf16.mxu0 0
    %534 = vmatpush1.bf16.msra.mxu0 %v512
    %535 = vmatprep.subr.bf16.mxu0 0
    %536 = vmatpush1.bf16.msra.mxu0 %v513
    %537 = vmatprep.subr.bf16.mxu0 0
    %538 = vmatpush1.bf16.msra.mxu0 %v514
    %539 = vmatprep.subr.bf16.mxu0 0
    %540 = vmatpush1.bf16.msra.mxu0 0
    %541 = vmatprep.subr.bf16.mxu0 0
    %542 = vmatpush1.bf16.msra.mxu0 0
    %543 = vmatprep.subr.bf16.mxu0 0
    %544 = vmatpush1.bf16.msra.mxu0 0
    %545 = vmatprep.subr.bf16.mxu0 0
    %546 = vmatpush1.bf16.msra.mxu0 0
    %547 = vmatprep.subr.bf16.mxu0 0
    %548 = vmatpush1.bf16.msra.mxu0 0
    %549 = vmatprep.subr.bf16.mxu0 0
    %550 = vmatpush1.bf16.msra.mxu0 0
    %551 = vmatprep.subr.bf16.mxu0 0
    %552 = vmatpush1.bf16.msra.mxu0 0
    %553 = vmatprep.subr.bf16.mxu0 0
    %554 = vmatpush1.bf16.msra.mxu0 0
    %555 = vmatprep.mubr.bf16.mxu0 0
    %556 = vmatmul.mubr.bf16.gmra.mrb[0].mxu0 %v451
    %v557 = vpop.f32.mrb[0].mxu0
    %v558 = vadd.f32 %v473, %v557
    %v559 = vpop.f32.mrb[0].mxu0
    %v560 = vpop.f32.mrb[0].mxu0
    %v561 = vpop.f32.mrb[0].mxu0
    %562 = vdwg.mxu0
    %563 = vst [vmem:[%s4] sm:$0xff] %v558
  $region25: #{simple_rnn_forward.1} parent=0 // pred_fallthru
    _
  // Predicated region
  $region26: #{simple_rnn_forward.1} parent=0 // pred_check
    _
  $region27: #{simple_rnn_forward.1} parent=0 // pred_check_branch
    %565 = sbr.rel (0) target = $region29
  $region28: #{simple_rnn_forward.1} parent=0 // pred_region
    _
  $region29: #{simple_rnn_forward.1} parent=0 // pred_fallthru
    _
  // Predicated region
  $region30: #{simple_rnn_forward.1} parent=0 // pred_check
    _
  $region31: #{simple_rnn_forward.1} parent=0 // pred_check_branch
    %567 = sbr.rel (0) target = $region33
  $region32: #{simple_rnn_forward.1} parent=0 // pred_region
    _
  $region33: #{simple_rnn_forward.1} parent=0 // pred_fallthru
    _

</llo_original>
